<compile_context>
chip_gen: v6e
topology: v6e:2x2x1
jax: 0.10.0
libtpu: 0.0.40
codegen_flags: <defaults>
</compile_context>

<pallas_src>
import functools

import jax
import jax.numpy as jnp
from jax.experimental import pallas as pl
from jax.experimental.pallas import tpu as pltpu

_GNLL_EPS = 1e-6                    # PyTorch GaussianNLLLoss default eps
_STEP_BYTES = 4 * 1024 * 1024       # target VMEM footprint per grid step


def _round_up(x, m):
    return (x + m - 1) // m * m


def _cdiv(a, b):
    return (a + b - 1) // b


def _combined_loss_kernel(age_pred_ref, age_actual_ref, age_var_ref,
                          logits_ref, tgt_ref, gnll_out_ref, ce_out_ref, *,
                          n_age, n_ce, tile_rows, n_cls, mask_age, mask_ce):
    """One batch tile -> two f32 partial sums splatted into aligned output blocks."""
    shape = (tile_rows, 128)
    if mask_age or mask_ce:
        # Global flat sample index of every element of this tile (sample j lives at
        # plane position (j // 128, j % 128)); masks grid overhang / 128-padding.
        base = pl.program_id(0) * (tile_rows * 128)
        row = jax.lax.broadcasted_iota(jnp.int32, shape, 0)
        lane = jax.lax.broadcasted_iota(jnp.int32, shape, 1)
        flat = base + row * 128 + lane

    # ---------------- Gaussian NLL partial sum (0.5 factor hoisted) ---------------
    ap = age_pred_ref[...].astype(jnp.float32)
    aa = age_actual_ref[...].astype(jnp.float32)
    av = age_var_ref[...].astype(jnp.float32)
    if mask_age:
        a_valid = flat < n_age
        ap = jnp.where(a_valid, ap, 0.0)
        aa = jnp.where(a_valid, aa, 0.0)
        av = jnp.where(a_valid, av, 1.0)
    var = jnp.maximum(av, _GNLL_EPS)
    diff = ap - aa
    gnll_sum = jnp.sum(jnp.log(var) + diff * diff / var)

    # ---------------- Cross-entropy partial sum (sublane-dense planes) ------------
    tgt = tgt_ref[...]
    if mask_ce:
        c_valid = flat < n_ce
        tgt = jnp.where(c_valid, tgt, 0)
    if n_cls == 2:
        l0 = logits_ref[0].astype(jnp.float32)
        l1 = logits_ref[1].astype(jnp.float32)
        if mask_ce:
            l0 = jnp.where(c_valid, l0, 0.0)
            l1 = jnp.where(c_valid, l1, 0.0)
        # Two-class log-sum-exp identity: one exp + one log per sample.
        lse = jnp.maximum(l0, l1) + jnp.log(1.0 + jnp.exp(-jnp.abs(l0 - l1)))
        picked = jnp.where(tgt == 1, l1, l0)
    else:
        x = logits_ref[...].astype(jnp.float32)          # (C, tr, 128)
        if mask_ce:
            x = jnp.where(c_valid[None], x, 0.0)
        mx = jnp.max(x, axis=0)                          # (tr, 128)
        lse = mx + jnp.log(jnp.sum(jnp.exp(x - mx[None]), axis=0))
        cls = jax.lax.broadcasted_iota(jnp.int32, x.shape, 0)
        picked = jnp.sum(jnp.where(cls == tgt[None], x, 0.0), axis=0)
    ce_term = lse - picked
    if mask_ce:
        ce_term = jnp.where(c_valid, ce_term, 0.0)
    ce_sum = jnp.sum(ce_term)

    # ---------------- Epilogue: splat the two partials ----------------------------
    gnll_out_ref[...] = jnp.full(gnll_out_ref.shape, gnll_sum, jnp.float32)
    ce_out_ref[...] = jnp.full(ce_out_ref.shape, ce_sum, jnp.float32)


@jax.jit
def combined_mivolo_loss(age_pred, age_actual, age_var, gender_pred, gender_actual):
    """JAX wrapper matching CombindMivoloLossAdjusted.forward."""
    age_pred = jnp.asarray(age_pred).reshape(-1)
    age_actual = jnp.asarray(age_actual).reshape(-1)
    age_var = jnp.asarray(age_var).reshape(-1)
    logits = jnp.asarray(gender_pred)                    # (N, C), native dtype
    tgt = jnp.asarray(gender_actual).reshape(-1).astype(jnp.int32)

    n_age = age_pred.shape[0]
    n_ce, n_cls = logits.shape

    cap = _round_up(max(n_age, n_ce), 128)               # common 128-aligned capacity
    rows = cap // 128

    def _plane(x, n):
        # Free reshape when already aligned; pad only the ragged remainder (< 128).
        if n != cap:
            x = jnp.pad(x, (0, cap - n))
        return x.reshape(rows, 128)

    ap2 = _plane(age_pred, n_age)
    aa2 = _plane(age_actual, n_age)
    av2 = _plane(age_var, n_age)
    tg2 = _plane(tgt, n_ce)

    # Gender logits -> class-major sublane-dense planes (C, rows, 128).
    # TODO(synk): this transpose is the one remaining extra HBM pass over the logits;
    # the natural (N, 2) layout would waste ~98% of each vreg/VMEM tile.
    lt = logits.T                                        # (C, N)
    if n_ce != cap:
        lt = jnp.pad(lt, ((0, 0), (0, cap - n_ce)))
    lg3 = lt.reshape(n_cls, rows, 128)

    # ---- tile sizing: >= 2 grid steps when possible, ~4 MiB per step ----
    bytes_per_row = 128 * (ap2.dtype.itemsize + aa2.dtype.itemsize +
                           av2.dtype.itemsize + n_cls * lg3.dtype.itemsize +
                           tg2.dtype.itemsize)
    budget_rows = max(8, (_STEP_BYTES // bytes_per_row) // 8 * 8)
    if rows <= 8:
        tile_rows = rows                                 # single block == full extent
    else:
        tile_rows = min(budget_rows, _round_up(_cdiv(rows, 2), 8))
    g = _cdiv(rows, tile_rows)

    capacity = g * tile_rows * 128
    kernel = functools.partial(
        _combined_loss_kernel,
        n_age=n_age, n_ce=n_ce, tile_rows=tile_rows, n_cls=n_cls,
        mask_age=(capacity != n_age), mask_ce=(capacity != n_ce))

    out_gnll, out_ce = pl.pallas_call(
        kernel,
        out_shape=(jax.ShapeDtypeStruct((g * 8, 128), jnp.float32),
                   jax.ShapeDtypeStruct((g * 8, 128), jnp.float32)),
        grid=(g,),
        in_specs=[
            pl.BlockSpec((tile_rows, 128), lambda i: (i, 0)),
            pl.BlockSpec((tile_rows, 128), lambda i: (i, 0)),
            pl.BlockSpec((tile_rows, 128), lambda i: (i, 0)),
            pl.BlockSpec((n_cls, tile_rows, 128), lambda i: (0, i, 0)),
            pl.BlockSpec((tile_rows, 128), lambda i: (i, 0)),
        ],
        out_specs=(pl.BlockSpec((8, 128), lambda i: (i, 0)),
                   pl.BlockSpec((8, 128), lambda i: (i, 0))),
        compiler_params=pltpu.CompilerParams(
            dimension_semantics=("parallel",),
            vmem_limit_bytes=32 * 1024 * 1024),
    )(ap2, aa2, av2, lg3, tg2)

    gnll_total = jnp.sum(out_gnll.reshape(g, 8, 128)[:, 0, 0])
    ce_total = jnp.sum(out_ce.reshape(g, 8, 128)[:, 0, 0])
    # Global-mean scaling (and the GNLL 0.5 factor) hoisted out of the kernel,
    # using the true element counts.
    return 0.5 * gnll_total / float(n_age) + ce_total / float(n_ce)


def _reference_loss(age_pred, age_actual, age_var, gender_pred, gender_actual):
    var = jnp.maximum(age_var, _GNLL_EPS)
    gnll = jnp.mean(0.5 * (jnp.log(var) + (age_pred - age_actual) ** 2 / var))
    logp = jax.nn.log_softmax(gender_pred, axis=-1)
    ce = -jnp.mean(jnp.take_along_axis(logp, gender_actual[:, None], axis=-1))
    return gnll + ce


if __name__ == "__main__":
    key = jax.random.PRNGKey(0)
    k1, k2, k3, k4, k5 = jax.random.split(key, 5)

    N, C = 8, 2  # batch of 8 samples, 2 gender classes
    age_pred = jax.random.normal(k1, (N,), jnp.float32) * 10.0 + 30.0
    age_actual = jax.random.normal(k2, (N,), jnp.float32) * 10.0 + 30.0
    age_var = jax.nn.softplus(jax.random.normal(k3, (N,), jnp.float32)) + 0.1
    gender_pred = jax.random.normal(k4, (N, C), jnp.float32)
    gender_actual = jax.random.randint(k5, (N,), 0, C, jnp.int32)

    loss = combined_mivolo_loss(age_pred, age_actual, age_var,
                                gender_pred, gender_actual)
    loss = jax.block_until_ready(loss)

    ref = _reference_loss(age_pred, age_actual, age_var,
                          gender_pred, gender_actual)
    assert jnp.allclose(loss, ref, rtol=1e-5, atol=1e-5), (loss, ref)

    # TODO(synk): PyTorch GaussianNLLLoss raises on negative variance (here var is
    # only clamped with eps, no error path) and CrossEntropyLoss's ignore_index=-100
    # is not implemented (all targets assumed to be valid class ids).
    print("KERNEL_OK")
</pallas_src>

<mosaic_0001>
module attributes {stable_mosaic.version = 11 : i64} {
  func.func @_combined_loss_kernel(%arg0: i32, %arg1: memref<1x128xf32, #tpu.memory_space<vmem>>, %arg2: memref<1x128xf32, #tpu.memory_space<vmem>>, %arg3: memref<1x128xf32, #tpu.memory_space<vmem>>, %arg4: memref<2x1x128xf32, #tpu.memory_space<vmem>>, %arg5: memref<1x128xi32, #tpu.memory_space<vmem>>, %arg6: memref<8x128xf32, #tpu.memory_space<vmem>>, %arg7: memref<8x128xf32, #tpu.memory_space<vmem>>) attributes {dimension_semantics = [#tpu.dimension_semantics<parallel>], iteration_bounds = array<i64: 1>, scalar_prefetch = 0 : i64, scratch_operands = 0 : i64, tpu.core_type = #tpu.core_type<tc>, window_params = [{transform_indices = @transform_0, window_bounds = array<i64: 1, 128>}, {transform_indices = @transform_1, window_bounds = array<i64: 1, 128>}, {transform_indices = @transform_2, window_bounds = array<i64: 1, 128>}, {transform_indices = @transform_3, window_bounds = array<i64: 2, 1, 128>}, {transform_indices = @transform_4, window_bounds = array<i64: 1, 128>}, {transform_indices = @transform_5, window_bounds = array<i64: 8, 128>}, {transform_indices = @transform_6, window_bounds = array<i64: 8, 128>}]} {
    %c128_i32 = arith.constant 128 : i32
    %0 = arith.muli %arg0, %c128_i32 : i32
    %1 = tpu.iota {dimensions = array<i32: 0>} : vector<1x128xi32>
    %2 = tpu.iota {dimensions = array<i32: 1>} : vector<1x128xi32>
    %c128_i32_0 = arith.constant 128 : i32
    %3 = vector.broadcast %c128_i32_0 : i32 to vector<1x128xi32>
    %4 = arith.muli %1, %3 : vector<1x128xi32>
    %5 = vector.broadcast %0 : i32 to vector<1x128xi32>
    %6 = arith.addi %5, %4 : vector<1x128xi32>
    %7 = arith.addi %6, %2 : vector<1x128xi32>
    %c0 = arith.constant 0 : index
    %c0_1 = arith.constant 0 : index
    %8 = vector.load %arg1[%c0, %c0_1] : memref<1x128xf32, #tpu.memory_space<vmem>>, vector<1x128xf32>
    %c0_2 = arith.constant 0 : index
    %c0_3 = arith.constant 0 : index
    %9 = vector.load %arg2[%c0_2, %c0_3] : memref<1x128xf32, #tpu.memory_space<vmem>>, vector<1x128xf32>
    %c0_4 = arith.constant 0 : index
    %c0_5 = arith.constant 0 : index
    %10 = vector.load %arg3[%c0_4, %c0_5] : memref<1x128xf32, #tpu.memory_space<vmem>>, vector<1x128xf32>
    %c8_i32 = arith.constant 8 : i32
    %11 = vector.broadcast %c8_i32 : i32 to vector<1x128xi32>
    %12 = arith.cmpi slt, %7, %11 : vector<1x128xi32>
    %cst = arith.constant 0.000000e+00 : f32
    %13 = vector.broadcast %cst : f32 to vector<1x128xf32>
    %14 = arith.select %12, %8, %13 : vector<1x128xi1>, vector<1x128xf32>
    %cst_6 = arith.constant 0.000000e+00 : f32
    %15 = vector.broadcast %cst_6 : f32 to vector<1x128xf32>
    %16 = arith.select %12, %9, %15 : vector<1x128xi1>, vector<1x128xf32>
    %cst_7 = arith.constant 1.000000e+00 : f32
    %17 = vector.broadcast %cst_7 : f32 to vector<1x128xf32>
    %18 = arith.select %12, %10, %17 : vector<1x128xi1>, vector<1x128xf32>
    %cst_8 = arith.constant 9.99999997E-7 : f32
    %19 = vector.broadcast %cst_8 : f32 to vector<1x128xf32>
    %20 = arith.maximumf %18, %19 : vector<1x128xf32>
    %21 = arith.subf %14, %16 : vector<1x128xf32>
    %22 = math.log %20 : vector<1x128xf32>
    %23 = arith.mulf %21, %21 : vector<1x128xf32>
    %24 = arith.divf %23, %20 : vector<1x128xf32>
    %25 = arith.addf %22, %24 : vector<1x128xf32>
    %26 = vector.shape_cast %25 : vector<1x128xf32> to vector<1x1x128xf32>
    %cst_9 = arith.constant dense<0.000000e+00> : vector<1xf32>
    %27 = vector.multi_reduction <add>, %26, %cst_9 [1, 2] : vector<1x1x128xf32> to vector<1xf32>
    %28 = vector.shape_cast %27 : vector<1xf32> to vector<1x1x1xf32>
    %29 = vector.extract %28[0, 0, 0] : f32 from vector<1x1x1xf32>
    %c0_10 = arith.constant 0 : index
    %c0_11 = arith.constant 0 : index
    %30 = vector.load %arg5[%c0_10, %c0_11] : memref<1x128xi32, #tpu.memory_space<vmem>>, vector<1x128xi32>
    %c8_i32_12 = arith.constant 8 : i32
    %31 = vector.broadcast %c8_i32_12 : i32 to vector<1x128xi32>
    %32 = arith.cmpi slt, %7, %31 : vector<1x128xi32>
    %c0_i32 = arith.constant 0 : i32
    %33 = vector.broadcast %c0_i32 : i32 to vector<1x128xi32>
    %34 = arith.select %32, %30, %33 : vector<1x128xi1>, vector<1x128xi32>
    %c0_13 = arith.constant 0 : index
    %c0_14 = arith.constant 0 : index
    %c0_15 = arith.constant 0 : index
    %35 = vector.load %arg4[%c0_13, %c0_14, %c0_15] : memref<2x1x128xf32, #tpu.memory_space<vmem>>, vector<1x1x128xf32>
    %36 = vector.shape_cast %35 : vector<1x1x128xf32> to vector<1x128xf32>
    %c1 = arith.constant 1 : index
    %c0_16 = arith.constant 0 : index
    %c0_17 = arith.constant 0 : index
    %37 = vector.load %arg4[%c1, %c0_16, %c0_17] : memref<2x1x128xf32, #tpu.memory_space<vmem>>, vector<1x1x128xf32>
    %38 = vector.shape_cast %37 : vector<1x1x128xf32> to vector<1x128xf32>
    %cst_18 = arith.constant 0.000000e+00 : f32
    %39 = vector.broadcast %cst_18 : f32 to vector<1x128xf32>
    %40 = arith.select %32, %36, %39 : vector<1x128xi1>, vector<1x128xf32>
    %cst_19 = arith.constant 0.000000e+00 : f32
    %41 = vector.broadcast %cst_19 : f32 to vector<1x128xf32>
    %42 = arith.select %32, %38, %41 : vector<1x128xi1>, vector<1x128xf32>
    %43 = arith.maximumf %40, %42 : vector<1x128xf32>
    %44 = arith.subf %40, %42 : vector<1x128xf32>
    %45 = math.absf %44 : vector<1x128xf32>
    %cst_20 = arith.constant 0.000000e+00 : f32
    %46 = vector.broadcast %cst_20 : f32 to vector<1x128xf32>
    %47 = arith.subf %46, %45 : vector<1x128xf32>
    %48 = math.exp %47 : vector<1x128xf32>
    %cst_21 = arith.constant 1.000000e+00 : f32
    %49 = vector.broadcast %cst_21 : f32 to vector<1x128xf32>
    %50 = arith.addf %49, %48 : vector<1x128xf32>
    %51 = math.log %50 : vector<1x128xf32>
    %52 = arith.addf %43, %51 : vector<1x128xf32>
    %c1_i32 = arith.constant 1 : i32
    %53 = vector.broadcast %c1_i32 : i32 to vector<1x128xi32>
    %54 = arith.cmpi eq, %34, %53 : vector<1x128xi32>
    %55 = arith.select %54, %42, %40 : vector<1x128xi1>, vector<1x128xf32>
    %56 = arith.subf %52, %55 : vector<1x128xf32>
    %cst_22 = arith.constant 0.000000e+00 : f32
    %57 = vector.broadcast %cst_22 : f32 to vector<1x128xf32>
    %58 = arith.select %32, %56, %57 : vector<1x128xi1>, vector<1x128xf32>
    %59 = vector.shape_cast %58 : vector<1x128xf32> to vector<1x1x128xf32>
    %cst_23 = arith.constant dense<0.000000e+00> : vector<1xf32>
    %60 = vector.multi_reduction <add>, %59, %cst_23 [1, 2] : vector<1x1x128xf32> to vector<1xf32>
    %61 = vector.shape_cast %60 : vector<1xf32> to vector<1x1x1xf32>
    %62 = vector.extract %61[0, 0, 0] : f32 from vector<1x1x1xf32>
    %63 = vector.broadcast %29 : f32 to vector<8x128xf32>
    %c0_24 = arith.constant 0 : index
    %c0_25 = arith.constant 0 : index
    %64 = vector.load %arg6[%c0_24, %c0_25] : memref<8x128xf32, #tpu.memory_space<vmem>>, vector<8x128xf32>
    tpu.vector_store %arg6[%c0_24, %c0_25], %63 {strides = array<i32>} : memref<8x128xf32, #tpu.memory_space<vmem>>, vector<8x128xf32>,
    %65 = vector.broadcast %62 : f32 to vector<8x128xf32>
    %c0_26 = arith.constant 0 : index
    %c0_27 = arith.constant 0 : index
    %66 = vector.load %arg7[%c0_26, %c0_27] : memref<8x128xf32, #tpu.memory_space<vmem>>, vector<8x128xf32>
    tpu.vector_store %arg7[%c0_26, %c0_27], %65 {strides = array<i32>} : memref<8x128xf32, #tpu.memory_space<vmem>>, vector<8x128xf32>,
    return
  }
  func.func @transform_0(%arg0: i32) -> (i32, i32) {
    %c0_i32 = arith.constant 0 : i32
    %c0_i32_0 = arith.constant 0 : i32
    return %arg0, %c0_i32 : i32, i32
  }
  func.func @transform_1(%arg0: i32) -> (i32, i32) {
    %c0_i32 = arith.constant 0 : i32
    %c0_i32_0 = arith.constant 0 : i32
    return %arg0, %c0_i32 : i32, i32
  }
  func.func @transform_2(%arg0: i32) -> (i32, i32) {
    %c0_i32 = arith.constant 0 : i32
    %c0_i32_0 = arith.constant 0 : i32
    return %arg0, %c0_i32 : i32, i32
  }
  func.func @transform_3(%arg0: i32) -> (i32, i32, i32) {
    %c0_i32 = arith.constant 0 : i32
    %c0_i32_0 = arith.constant 0 : i32
    %c0_i32_1 = arith.constant 0 : i32
    return %c0_i32, %arg0, %c0_i32_0 : i32, i32, i32
  }
  func.func @transform_4(%arg0: i32) -> (i32, i32) {
    %c0_i32 = arith.constant 0 : i32
    %c0_i32_0 = arith.constant 0 : i32
    return %arg0, %c0_i32 : i32, i32
  }
  func.func @transform_5(%arg0: i32) -> (i32, i32) {
    %c0_i32 = arith.constant 0 : i32
    %c0_i32_0 = arith.constant 0 : i32
    return %arg0, %c0_i32 : i32, i32
  }
  func.func @transform_6(%arg0: i32) -> (i32, i32) {
    %c0_i32 = arith.constant 0 : i32
    %c0_i32_0 = arith.constant 0 : i32
    return %arg0, %c0_i32 : i32, i32
  }
}

</mosaic_0001>

<llo_original>
// kernel: combined_mivolo_loss.1
$region0: #{combined_mivolo_loss.1}
  #allocation0 [shape = 'u32[]', space=smem, size = 0x4, offset = 0x4, fixed_abs, tag = 'smem constant byte address 0x4 - core index']
  #allocation1 [shape = 'u32[144,128]{1,0:T(1,128)}', space=vmem, size = 0x12000, scoped, tag = 'internal scratch']
  %s0 = inlined_call_operand.vmem [shape: f32[1,128], index: 0, kind: input, shape index: {}]
  %s1 = inlined_call_operand.vmem [shape: f32[1,128], index: 1, kind: input, shape index: {}]
  %s2 = inlined_call_operand.vmem [shape: f32[1,128], index: 2, kind: input, shape index: {}]
  %s3 = inlined_call_operand.vmem [shape: f32[2,1,128], index: 3, kind: input, shape index: {}]
  %s4 = inlined_call_operand.vmem [shape: s32[1,128], index: 4, kind: input, shape index: {}]
  %s5 = inlined_call_operand.vmem [shape: f32[8,128], index: 5, kind: output, shape index: {0}]
  %s6 = inlined_call_operand.vmem [shape: f32[8,128], index: 6, kind: output, shape index: {1}]
  %7 = xla_tuple %s5, %s6
  %s8 = sld [smem:[#allocation0]]
  $region38: #{combined_mivolo_loss.1} parent=0
    _
  %s10 = ssub.s32 1, %s8
  %s11 = scalar_select 0, %s10, %s8
  // Predicated region
  $region2: #{combined_mivolo_loss.1} parent=0 // pred_check
    _
  $region3: #{combined_mivolo_loss.1} parent=0 // pred_check_branch
    %13 = sbr.rel (0) target = $region5
  $region4: #{combined_mivolo_loss.1} parent=0 // pred_region
    _
  $region5: #{combined_mivolo_loss.1} parent=0 // pred_fallthru
    _
  // Predicated region
  $region6: #{combined_mivolo_loss.1} parent=0 // pred_check
    _
  $region7: #{combined_mivolo_loss.1} parent=0 // pred_check_branch
    %15 = sbr.rel (0) target = $region9
  $region8: #{combined_mivolo_loss.1} parent=0 // pred_region
    _
  $region9: #{combined_mivolo_loss.1} parent=0 // pred_fallthru
    _
  // Predicated region
  $region10: #{combined_mivolo_loss.1} parent=0 // pred_check
    _
  $region11: #{combined_mivolo_loss.1} parent=0 // pred_check_branch
    %17 = sbr.rel (0) target = $region13
  $region12: #{combined_mivolo_loss.1} parent=0 // pred_region
    _
  $region13: #{combined_mivolo_loss.1} parent=0 // pred_fallthru
    _
  // Predicated region
  $region14: #{combined_mivolo_loss.1} parent=0 // pred_check
    _
  $region15: #{combined_mivolo_loss.1} parent=0 // pred_check_branch
    %19 = sbr.rel (0) target = $region17
  $region16: #{combined_mivolo_loss.1} parent=0 // pred_region
    _
  $region17: #{combined_mivolo_loss.1} parent=0 // pred_fallthru
    _
  // Predicated region
  $region18: #{combined_mivolo_loss.1} parent=0 // pred_check
    _
  $region19: #{combined_mivolo_loss.1} parent=0 // pred_check_branch
    %21 = sbr.rel (0) target = $region21
  $region20: #{combined_mivolo_loss.1} parent=0 // pred_region
    _
  $region21: #{combined_mivolo_loss.1} parent=0 // pred_fallthru
    _
  %s22 = smul.u32 0, 128
  %v23 = vlaneseq
  %v24 = vshrl.u32 %v23, 7
  %v25 = vlaneseq
  %v26 = vand.u32 %v25, 127
  %v27 = vmul.u32 %v24, 128
  %v28 = vstv %s22
  %v29 = vadd.s32 %v28, %v27
  %v30 = vadd.s32 %v29, %v26
  %v31 = vld [vmem:[%s0] sm:$0x1]
  %v32 = vld [vmem:[%s1] sm:$0x1]
  %v33 = vld [vmem:[%s2] sm:$0x1]
  %vm34 = vcmp.lt.s32.totalorder %v30, 8
  %v35 = vsel %vm34, %v31, 0.0
  %v36 = vsel %vm34, %v32, 0.0
  %v37 = vsel %vm34, %v33, 1.0
  %v38 = vmax.f32 %v37, 1e-06
  %v39 = vsub.f32 %v35, %v36
  %v40 = vlog2.pop %v38
  %v41 = vmul.f32 %v40, 0.6931472
  %v42 = vmul.f32 %v39, %v39
  %v43 = vrcp.pop %v38
  %v44 = vmul.f32 %v42, %v43
  %v45 = vadd.f32 %v41, %v44
  %vm46 = vcmask 1040384
  %v47 = vsel %vm46, %v45, 0.0
  %48 = vadd.xlane.f32.xlu0 %v47
  %v49 = vpop.xlane.xlu0 %48
  %v50 = vrot.slane %v49, 4
  %v51 = vadd.f32 %v49, %v50
  %v52 = vrot.slane %v51, 2
  %v53 = vadd.f32 %v51, %v52
  %v54 = vrot.slane %v53, 1
  %v55 = vadd.f32 %v53, %v54
  %s56 = vtos %v55
  %v57 = vld [vmem:[%s4] sm:$0x1]
  %v58 = vsel %vm34, %v57, 0
  %v59 = vld [vmem:[%s3] sm:$0x1]
  %s60 = scalar_lea.vmem %s3, 1
  %v61 = vld [vmem:[%s60] sm:$0x1]
  %v62 = vsel %vm34, %v59, 0.0
  %v63 = vsel %vm34, %v61, 0.0
  %v64 = vmax.f32 %v62, %v63
  %v65 = vsub.f32 %v62, %v63
  %v66 = vand.u32 2147483647, %v65
  %v67 = vsub.f32 0.0, %v66
  %v68 = vmul.f32 %v67, 1.442695
  %v69 = vpow.pop %v68
  %v70 = vadd.f32 %v69, 1.0
  %v71 = vlog2.pop %v70
  %v72 = vmul.f32 %v71, 0.6931472
  %v73 = vadd.f32 %v64, %v72
  %vm74 = vcmp.eq.s32.totalorder %v58, 1
  %v75 = vsel %vm74, %v63, %v62
  %v76 = vsub.f32 %v73, %v75
  %v77 = vsel %vm34, %v76, 0.0
  %v78 = vsel %vm46, %v77, 0.0
  %79 = vadd.xlane.f32.xlu0 %v78
  %v80 = vpop.xlane.xlu0 %79
  %v81 = vrot.slane %v80, 4
  %v82 = vadd.f32 %v80, %v81
  %v83 = vrot.slane %v82, 2
  %v84 = vadd.f32 %v82, %v83
  %v85 = vrot.slane %v84, 1
  %v86 = vadd.f32 %v84, %v85
  %s87 = vtos %v86
  %v88 = vstv %s56
  %89 = vst [vmem:[%s5] sm:$0xff] %v88
  %v90 = vstv %s87
  %91 = vst [vmem:[%s6] sm:$0xff] %v90
  // Predicated region
  $region22: #{combined_mivolo_loss.1} parent=0 // pred_check
    _
  $region23: #{combined_mivolo_loss.1} parent=0 // pred_check_branch
    %93 = sbr.rel (0) target = $region25
  $region24: #{combined_mivolo_loss.1} parent=0 // pred_region
    _
  $region25: #{combined_mivolo_loss.1} parent=0 // pred_fallthru
    _
  // Predicated region
  $region26: #{combined_mivolo_loss.1} parent=0 // pred_check
    _
  $region27: #{combined_mivolo_loss.1} parent=0 // pred_check_branch
    %95 = sbr.rel (0) target = $region29
  $region28: #{combined_mivolo_loss.1} parent=0 // pred_region
    _
  $region29: #{combined_mivolo_loss.1} parent=0 // pred_fallthru
    _
  // Predicated region
  $region30: #{combined_mivolo_loss.1} parent=0 // pred_check
    _
  $region31: #{combined_mivolo_loss.1} parent=0 // pred_check_branch
    %97 = sbr.rel (0) target = $region33
  $region32: #{combined_mivolo_loss.1} parent=0 // pred_region
    _
  $region33: #{combined_mivolo_loss.1} parent=0 // pred_fallthru
    _
  // Predicated region
  $region34: #{combined_mivolo_loss.1} parent=0 // pred_check
    _
  $region35: #{combined_mivolo_loss.1} parent=0 // pred_check_branch
    %99 = sbr.rel (0) target = $region37
  $region36: #{combined_mivolo_loss.1} parent=0 // pred_region
    _
  $region37: #{combined_mivolo_loss.1} parent=0 // pred_fallthru
    _

</llo_original>
